<compile_context>
chip_gen: v5e
topology: v5e:2x2
jax: 0.10.0
libtpu: 0.0.40
codegen_flags: <defaults>
</compile_context>

<pallas_src>
import functools

import jax
import jax.numpy as jnp
from jax.experimental import pallas as pl
from jax.experimental.pallas import tpu as pltpu

_LANES = 128
_SUBLANES = 8
_BLOCK_BYTES = 2 * 1024 * 1024  # ~2 MiB per block per array (in + out, double-buffered)


def _dorefa_a_kernel(x_ref, o_ref, *, scale, inv_scale, do_quant):
    # Compute in f32 regardless of storage dtype; I/O stays in the input dtype.
    a = jnp.clip(x_ref[...].astype(jnp.float32), 0.0, 1.0)
    if do_quant:
        # round(a * scale) / scale, scale = 2**nbit - 1.
        # jnp.round matches torch.round (round-half-to-even).
        a = jnp.round(a * scale) * inv_scale
    o_ref[...] = a.astype(o_ref.dtype)


def dorefa_a(x, nbit_a: int):
    """Forward of DoReFaA: clamp to [0,1], then DoReFa-quantize to nbit_a bits."""
    orig_shape = x.shape
    dtype = x.dtype

    flat = x.reshape(-1)
    n = flat.shape[0]

    # Pad up to a whole (8, 128) vreg tile so every block shape is legal even
    # for tiny inputs; usually zero pad for typical NCHW activation sizes.
    vreg_elems = _SUBLANES * _LANES
    pad = (-n) % vreg_elems
    if pad:
        flat = jnp.pad(flat, (0, pad))
    rows = flat.shape[0] // _LANES
    x2d = flat.reshape(rows, _LANES)

    # Block rows: ~2 MiB per block in the I/O dtype, multiple of 8, never more
    # than the (sublane-aligned) row count.
    itemsize = jnp.dtype(dtype).itemsize
    max_rows = max(_SUBLANES, _BLOCK_BYTES // (_LANES * itemsize))
    tile_rows = min(max_rows, rows)
    tile_rows = max(_SUBLANES, (tile_rows // _SUBLANES) * _SUBLANES)

    do_quant = (nbit_a != 32)
    scale = float(2 ** nbit_a - 1) if do_quant else 1.0

    kernel = functools.partial(
        _dorefa_a_kernel, scale=scale, inv_scale=1.0 / scale, do_quant=do_quant)

    grid = (pl.cdiv(rows, tile_rows),)
    out2d = pl.pallas_call(
        kernel,
        out_shape=jax.ShapeDtypeStruct((rows, _LANES), dtype),
        grid_spec=pltpu.PrefetchScalarGridSpec(
            num_scalar_prefetch=0,
            grid=grid,
            in_specs=[pl.BlockSpec((tile_rows, _LANES), lambda i: (i, 0))],
            out_specs=pl.BlockSpec((tile_rows, _LANES), lambda i: (i, 0)),
        ),
        compiler_params=pltpu.CompilerParams(
            dimension_semantics=("parallel",),
            vmem_limit_bytes=32 * 1024 * 1024,
        ),
    )(x2d)

    out_flat = out2d.reshape(-1)
    if pad:
        out_flat = out_flat[:n]
    return out_flat.reshape(orig_shape)


def _reference(x, nbit_a):
    # Reference mirrors the kernel's numerics: f32 math, cast back to x.dtype.
    a = jnp.clip(x.astype(jnp.float32), 0.0, 1.0)
    if nbit_a != 32:
        scale = float(2 ** nbit_a - 1)
        a = jnp.round(a * scale) / scale
    return a.astype(x.dtype)


if __name__ == "__main__":
    key = jax.random.PRNGKey(0)
    # Small NCHW input with values outside [0,1] so the clamp matters.
    x = jax.random.uniform(key, (2, 4, 16, 16), jnp.float32, minval=-0.5, maxval=1.5)

    # 4-bit quantization path.
    out = dorefa_a(x, 4)
    jax.block_until_ready(out)
    ref = _reference(x, 4)
    assert out.shape == x.shape and out.dtype == x.dtype
    assert jnp.allclose(out, ref, atol=1e-6), "mismatch vs reference (nbit=4)"

    # nbit == 32 passthrough path (clamp only).
    out32 = dorefa_a(x, 32)
    jax.block_until_ready(out32)
    assert jnp.allclose(out32, _reference(x, 32), atol=1e-6), "mismatch (nbit=32)"

    # bf16 input path: HBM I/O stays in bf16 (no wrapper upcast).
    xb = x.astype(jnp.bfloat16)
    outb = dorefa_a(xb, 4)
    jax.block_until_ready(outb)
    assert outb.dtype == jnp.bfloat16 and outb.shape == xb.shape
    assert jnp.allclose(outb.astype(jnp.float32),
                        _reference(xb, 4).astype(jnp.float32), atol=1e-6), \
        "mismatch vs reference (bf16)"

    # Non-multiple-of-1024 element count exercises the padding path.
    x_odd = jax.random.uniform(jax.random.PRNGKey(0), (3, 5, 7), jnp.float32,
                               minval=-0.5, maxval=1.5)
    out_odd = dorefa_a(x_odd, 2)
    jax.block_until_ready(out_odd)
    assert jnp.allclose(out_odd, _reference(x_odd, 2), atol=1e-6), "mismatch (odd shape)"

    print("KERNEL_OK")
</pallas_src>

<mosaic_0001>
module attributes {stable_mosaic.version = 11 : i64} {
  func.func @_dorefa_a_kernel(%arg0: i32, %arg1: memref<16x128xf32, #tpu.memory_space<vmem>>, %arg2: memref<16x128xf32, #tpu.memory_space<vmem>>) attributes {dimension_semantics = [#tpu.dimension_semantics<parallel>], iteration_bounds = array<i64: 1>, scalar_prefetch = 0 : i64, scratch_operands = 0 : i64, tpu.core_type = #tpu.core_type<tc>, window_params = [{transform_indices = @transform_0, window_bounds = array<i64: 16, 128>}, {transform_indices = @transform_1, window_bounds = array<i64: 16, 128>}]} {
    %c0 = arith.constant 0 : index
    %c0_0 = arith.constant 0 : index
    %0 = vector.load %arg1[%c0, %c0_0] : memref<16x128xf32, #tpu.memory_space<vmem>>, vector<16x128xf32>
    %cst = arith.constant 0.000000e+00 : f32
    %cst_1 = arith.constant 1.000000e+00 : f32
    %1 = vector.broadcast %cst : f32 to vector<16x128xf32>
    %2 = arith.maximumf %1, %0 : vector<16x128xf32>
    %3 = vector.broadcast %cst_1 : f32 to vector<16x128xf32>
    %4 = arith.minimumf %3, %2 : vector<16x128xf32>
    %cst_2 = arith.constant 1.500000e+01 : f32
    %5 = vector.broadcast %cst_2 : f32 to vector<16x128xf32>
    %6 = arith.mulf %4, %5 : vector<16x128xf32>
    %7 = math.roundeven %6 : vector<16x128xf32>
    %cst_3 = arith.constant 0.0666666701 : f32
    %8 = vector.broadcast %cst_3 : f32 to vector<16x128xf32>
    %9 = arith.mulf %7, %8 : vector<16x128xf32>
    %c0_4 = arith.constant 0 : index
    %c0_5 = arith.constant 0 : index
    %10 = vector.load %arg2[%c0_4, %c0_5] : memref<16x128xf32, #tpu.memory_space<vmem>>, vector<16x128xf32>
    tpu.vector_store %arg2[%c0_4, %c0_5], %9 {strides = array<i32>} : memref<16x128xf32, #tpu.memory_space<vmem>>, vector<16x128xf32>,
    return
  }
  func.func @transform_0(%arg0: i32) -> (i32, i32) {
    %c0_i32 = arith.constant 0 : i32
    %c0_i32_0 = arith.constant 0 : i32
    return %arg0, %c0_i32 : i32, i32
  }
  func.func @transform_1(%arg0: i32) -> (i32, i32) {
    %c0_i32 = arith.constant 0 : i32
    %c0_i32_0 = arith.constant 0 : i32
    return %arg0, %c0_i32 : i32, i32
  }
}

</mosaic_0001>

<llo_original>
// kernel: tpu_custom_call.1
$region0: #{tpu_custom_call.1}
  #allocation0 [shape = 'u32[]', space=smem, size = 0x4, offset = 0x4, fixed_abs, tag = 'smem constant byte address 0x4 - core index']
  #allocation1 [shape = 'u32[72,128]{1,0:T(1,128)}', space=vmem, size = 0x9000, scoped, tag = 'internal scratch']
  %s0 = inlined_call_operand.hbm [shape: f32[16,128], index: 0, kind: input, shape index: {}]
  %s1 = inlined_call_operand.hbm [shape: f32[16,128], index: 1, kind: output, shape index: {}]
  %s2 = sld [smem:[#allocation0]]
  $region18: #{tpu_custom_call.1} parent=0
    _
  %s4 = ssub.s32 1, %s2
  %s5 = scalar_select 0, %s4, %s2
  $region1: #{tpu_custom_call.1} parent=0
    #allocation2 [shape = 'u8[8192]{0}', space=vmem, size = 0x2000, scoped, tag = 'input window, operand 0, single buffered']
    #allocation3 [shape = 's32[1]{0}', space=sflag, size = 0x4, scoped, tag = 'scoped memory for tpu_custom_call.1']
    #allocation4 [shape = 's32[1]{0}', space=sflag, size = 0x4, scoped, tag = 'scoped memory for tpu_custom_call.1']
    #allocation5 [shape = 'u8[8192]{0}', space=vmem, size = 0x2000, scoped, tag = 'output window, operand 0, single buffered']
    %6 = vsyncpa [#allocation3], 0
    %7 = vsyncpa [#allocation4], 0
    // Predicated region
    $region2: #{tpu_custom_call.1} parent=1 // pred_check
      _
    $region3: #{tpu_custom_call.1} parent=1 // pred_check_branch
      %9 = sbr.rel (0) target = $region5
    $region4: #{tpu_custom_call.1} parent=1 // pred_region
      %11 = vsyncadd [#allocation3], 0
      %s12 = sshll.u32 %s0, 4
      %s13 = int_to_ptr.hbm [resolvable:$true] %s12
      %s14 = sshll.u32 [#allocation2], 4
      %s15 = int_to_ptr.vmem [resolvable:$true] %s14
      %20 = dma.hbm_to_vmem [thread:$0]  %s13, 256, %s15, [#allocation3], 128, 128, 8
    $region5: #{tpu_custom_call.1} parent=1 // pred_fallthru
      _
    // Predicated region
    $region6: #{tpu_custom_call.1} parent=1 // pred_check
      _
    $region7: #{tpu_custom_call.1} parent=1 // pred_check_branch
      %22 = sbr.rel (0) target = $region9
    $region8: #{tpu_custom_call.1} parent=1 // pred_region
      %24 = dma.done [#allocation3], 256
    $region9: #{tpu_custom_call.1} parent=1 // pred_fallthru
      _
    %v25 = vld [vmem:[#allocation2] sm:$0xff]
    %v26 = vld [vmem:[#allocation2 + $0x8] sm:$0xff]
    %v27 = vmax.f32 %v25, 0.0
    %v28 = vmax.f32 %v26, 0.0
    %v29 = vmin.f32 %v27, 1.0
    %v30 = vmin.f32 %v28, 1.0
    %v31 = vmul.f32 %v29, 15.0
    %v32 = vmul.f32 %v30, 15.0
    %v33 = vround.ne.pseudo %v31
    %v34 = vround.ne.pseudo %v32
    %v35 = vmul.f32 %v33, 0.06666667
    %v36 = vmul.f32 %v34, 0.06666667
    %37 = vst [vmem:[#allocation5] sm:$0xff] %v35
    %38 = vst [vmem:[#allocation5 + $0x8] sm:$0xff] %v36
    // Predicated region
    $region10: #{tpu_custom_call.1} parent=1 // pred_check
      _
    $region11: #{tpu_custom_call.1} parent=1 // pred_check_branch
      %40 = sbr.rel (0) target = $region13
    $region12: #{tpu_custom_call.1} parent=1 // pred_region
      %42 = vsyncadd [#allocation4], 0
      %s43 = sshll.u32 [#allocation5], 4
      %s44 = int_to_ptr.vmem [resolvable:$true] %s43
      %s45 = sshll.u32 %s1, 4
      %s46 = int_to_ptr.hbm [resolvable:$true] %s45
      %51 = dma.vmem_to_hbm [thread:$0]  %s44, 256, %s46, [#allocation4], 128, 128, 8
    $region13: #{tpu_custom_call.1} parent=1 // pred_fallthru
      _
    // Predicated region
    $region14: #{tpu_custom_call.1} parent=1 // pred_check
      _
    $region15: #{tpu_custom_call.1} parent=1 // pred_check_branch
      %53 = sbr.rel (0) target = $region17
    $region16: #{tpu_custom_call.1} parent=1 // pred_region
      %55 = dma.done [#allocation4], 256
    $region17: #{tpu_custom_call.1} parent=1 // pred_fallthru
      _
    %56 = vsyncpa [#allocation3], 1
    %57 = vsyncpa [#allocation4], 1

</llo_original>
